<compile_context>
chip_gen: v7x
topology: tpu7x:2x2x1
jax: 0.10.0
libtpu: 0.0.40
codegen_flags: <defaults>
</compile_context>

<pallas_src>
import jax
import jax.numpy as jnp
from jax.experimental import pallas as pl
from jax.experimental.pallas import tpu as pltpu

_LANE = 128
_VMEM_LIMIT = 32 * 1024 * 1024  # >= 2 bufs x (in + out) x max block (4 MiB)


def _chip_traits():
    """Generation-aware knobs; safe defaults if detection fails."""
    kind = ""
    try:
        kind = jax.devices()[0].device_kind.lower()
    except Exception:
        pass
    is_v7 = "7" in kind                           # "TPU7x" / "TPU v7x"
    has_bf16_vpu = is_v7 or ("v6" in kind) or ("6e" in kind)
    num_tensorcores = 2 if is_v7 else 1           # v5e/v6e: 1 TC; v7x: 2 TCs
    # v7x HBM shrinks per-block DMA time, so amortize per-step overhead over
    # bigger blocks there (4 MiB vs 2 MiB).
    max_tile_bytes = (4 << 20) if is_v7 else (2 << 20)
    return num_tensorcores, max_tile_bytes, has_bf16_vpu


def _make_brightness_kernel(compute_dtype):
    def kernel(factor_ref, x_ref, o_ref):
        # factor_ref: SMEM scalar (prefetched); x_ref / o_ref: VMEM tiles.
        f = factor_ref[0].astype(compute_dtype)
        y = jnp.clip(x_ref[...].astype(compute_dtype) * f, 0.0, 1.0)
        o_ref[...] = y.astype(o_ref.dtype)
    return kernel


def _pick_tile_rows(rows, itemsize, num_tensorcores, max_tile_bytes):
    """Row-tile that is (8,128)-legal, large (HBM roofline), and — only on
    multi-TensorCore chips — gives the 'parallel' grid axis >= 2 steps when
    the whole array would otherwise fit in one block."""
    if rows <= 8:
        return rows                       # full-extent block is always legal
    max_rows = max(8, (max_tile_bytes // (_LANE * itemsize)) // 8 * 8)
    tile = min(max_rows, rows)
    if tile == rows and num_tensorcores >= 2:
        # Split in two so both v7x TensorCores get work; round half up to 8.
        half = (((rows + 1) // 2) + 7) // 8 * 8
        if half < rows:
            tile = half
    return tile


def random_brightness(img, key, brightness_range=(0.8, 1.2), donate=False):
    """img: float array (e.g. NCHW) with values in [0, 1]."""
    if not jnp.issubdtype(img.dtype, jnp.floating):
        raise ValueError(
            "random_brightness expects a normalized float image in [0, 1]; "
            f"got dtype {img.dtype}")

    lo, hi = brightness_range
    factor = jax.random.uniform(key, (1,), dtype=jnp.float32,
                                minval=lo, maxval=hi)

    orig_shape = img.shape
    total = img.size
    if total == 0:
        return img

    num_tc, max_tile_bytes, has_bf16_vpu = _chip_traits()
    if img.dtype == jnp.float32 or not has_bf16_vpu:
        compute_dtype = jnp.float32       # v5e has no bf16 VALU
    else:
        compute_dtype = img.dtype         # bf16 math on v6e/v7x

    flat = img.reshape(-1)
    rows = pl.cdiv(total, _LANE)
    padded = rows * _LANE
    if padded != total:
        # TODO(synk): rare lane-unaligned totals pay one pad pass (input) and
        # one slice pass (output); an in-kernel masked tail store would remove
        # both. No concatenate of the full-size output anymore.
        flat = jnp.pad(flat, (0, padded - total))
    x2d = flat.reshape(rows, _LANE)

    tile_rows = _pick_tile_rows(rows, x2d.dtype.itemsize, num_tc,
                                max_tile_bytes)
    grid = (pl.cdiv(rows, tile_rows),)

    extra = {}
    if donate:
        # arg 0 = prefetched factor, arg 1 = x2d; aliasing x2d with the output
        # drops the extra full-image HBM output allocation when the caller
        # donates `img` (XLA inserts a copy otherwise, so it is always safe).
        extra["input_output_aliases"] = {1: 0}

    out2d = pl.pallas_call(
        _make_brightness_kernel(compute_dtype),
        out_shape=jax.ShapeDtypeStruct((rows, _LANE), img.dtype),
        grid_spec=pltpu.PrefetchScalarGridSpec(
            num_scalar_prefetch=1,
            grid=grid,
            in_specs=[
                pl.BlockSpec((tile_rows, _LANE), lambda i, _f: (i, 0)),
            ],
            out_specs=pl.BlockSpec((tile_rows, _LANE), lambda i, _f: (i, 0)),
        ),
        compiler_params=pltpu.CompilerParams(
            # TODO(synk): verify on xprof that "parallel" actually shards the
            # 1-D grid across both v7x TensorCores; if not, switch to
            # CORE_PARALLEL on a leading size-2 grid axis.
            dimension_semantics=("parallel",),
            vmem_limit_bytes=_VMEM_LIMIT,
        ),
        **extra,
    )(factor, x2d)

    out_flat = out2d.reshape(-1)
    if padded != total:
        out_flat = out_flat[:total]
    return out_flat.reshape(orig_shape)


if __name__ == "__main__":
    key = jax.random.PRNGKey(0)
    k_img, k_factor, k_img2 = jax.random.split(key, 3)

    # NCHW, values in [0, 1] like a normalized image.
    x = jax.random.uniform(k_img, (2, 4, 16, 16), dtype=jnp.float32)

    out = jax.block_until_ready(random_brightness(x, k_factor,
                                                  brightness_range=(0.8, 1.2)))

    # Reference check in plain JAX (same factor sampling).
    factor = jax.random.uniform(k_factor, (1,), dtype=jnp.float32,
                                minval=0.8, maxval=1.2)
    ref = jnp.clip(x * factor[0], 0.0, 1.0)
    assert out.shape == x.shape and out.dtype == x.dtype
    assert jnp.max(jnp.abs(out - ref)) < 1e-6

    # Aliased-output (donate) path.
    out_d = jax.block_until_ready(random_brightness(x, k_factor, donate=True))
    assert jnp.max(jnp.abs(out_d - ref)) < 1e-6

    # Lane-unaligned element count (exercises the pad path; 1*3*7*9 = 189).
    y = jax.random.uniform(k_img2, (1, 3, 7, 9), dtype=jnp.float32)
    out_y = jax.block_until_ready(random_brightness(y, k_factor))
    ref_y = jnp.clip(y * factor[0], 0.0, 1.0)
    assert out_y.shape == y.shape
    assert jnp.max(jnp.abs(out_y - ref_y)) < 1e-6

    print("KERNEL_OK")
</pallas_src>

<mosaic_0001>
module attributes {stable_mosaic.version = 11 : i64} {
  func.func @kernel(%arg0: i32, %arg1: memref<1xf32, #tpu.memory_space<smem>>, %arg2: memref<16x128xf32, #tpu.memory_space<vmem>>, %arg3: memref<16x128xf32, #tpu.memory_space<vmem>>) attributes {dimension_semantics = [#tpu.dimension_semantics<parallel>], iteration_bounds = array<i64: 1>, scalar_prefetch = 1 : i64, scratch_operands = 0 : i64, tpu.core_type = #tpu.core_type<tc>, window_params = [{transform_indices = @transform_0, window_bounds = array<i64: 16, 128>}, {transform_indices = @transform_1, window_bounds = array<i64: 16, 128>}]} {
    %c0 = arith.constant 0 : index
    %0 = memref.load %arg1[%c0] : memref<1xf32, #tpu.memory_space<smem>>
    %c0_0 = arith.constant 0 : index
    %c0_1 = arith.constant 0 : index
    %1 = vector.load %arg2[%c0_0, %c0_1] : memref<16x128xf32, #tpu.memory_space<vmem>>, vector<16x128xf32>
    %2 = vector.broadcast %0 : f32 to vector<16x128xf32>
    %3 = arith.mulf %1, %2 : vector<16x128xf32>
    %cst = arith.constant 0.000000e+00 : f32
    %cst_2 = arith.constant 1.000000e+00 : f32
    %4 = vector.broadcast %cst : f32 to vector<16x128xf32>
    %5 = arith.maximumf %4, %3 : vector<16x128xf32>
    %6 = vector.broadcast %cst_2 : f32 to vector<16x128xf32>
    %7 = arith.minimumf %6, %5 : vector<16x128xf32>
    %c0_3 = arith.constant 0 : index
    %c0_4 = arith.constant 0 : index
    %8 = vector.load %arg3[%c0_3, %c0_4] : memref<16x128xf32, #tpu.memory_space<vmem>>, vector<16x128xf32>
    tpu.vector_store %arg3[%c0_3, %c0_4], %7 {strides = array<i32>} : memref<16x128xf32, #tpu.memory_space<vmem>>, vector<16x128xf32>,
    return
  }
  func.func @transform_0(%arg0: i32, %arg1: memref<1xf32, #tpu.memory_space<smem>>) -> (i32, i32) {
    %c0_i32 = arith.constant 0 : i32
    %c0_i32_0 = arith.constant 0 : i32
    return %arg0, %c0_i32 : i32, i32
  }
  func.func @transform_1(%arg0: i32, %arg1: memref<1xf32, #tpu.memory_space<smem>>) -> (i32, i32) {
    %c0_i32 = arith.constant 0 : i32
    %c0_i32_0 = arith.constant 0 : i32
    return %arg0, %c0_i32 : i32, i32
  }
}

</mosaic_0001>

<llo_original>
// kernel: tpu_custom_call.1
$region0: #{tpu_custom_call.1}
  #allocation0 [shape = 'u32[]', space=smem, size = 0x4, offset = 0x4, fixed_abs, tag = 'smem constant byte address 0x4 - core index']
  #allocation1 [shape = 'u32[144,128]{1,0:T(1,128)}', space=vmem, size = 0x12000, scoped, tag = 'internal scratch']
  #allocation2 [shape = 's32[1]{0}', space=sflag, size = 0x4, scoped, tag = 'scoped memory for tpu_custom_call.1']
  #allocation3 [shape = 'f32[1]{0:T(128)S(6)}', space=smem, size = 0x200, scoped, tag = 'prefetched SMEM operand 0']
  %s0 = inlined_call_operand.<no memory space> [shape: f32[1], index: 0, kind: input, shape index: {}]
  %s1 = inlined_call_operand.hbm [shape: f32[16,128], index: 1, kind: input, shape index: {}]
  %s2 = inlined_call_operand.hbm [shape: f32[16,128], index: 2, kind: output, shape index: {}]
  %s3 = sld [smem:[#allocation0]]
  $region18: #{tpu_custom_call.1} parent=0
    _
  %s5 = ssub.s32 1, %s3
  %s6 = scalar_select 0, %s5, %s3
  %7 = sst [smem:[#allocation3]] %s0
  $region1: #{tpu_custom_call.1} parent=0
    #allocation4 [shape = 'u8[8192]{0}', space=vmem, size = 0x2000, scoped, tag = 'input window, operand 1, single buffered']
    #allocation5 [shape = 's32[1]{0}', space=sflag, size = 0x4, scoped, tag = 'scoped memory for tpu_custom_call.1']
    #allocation6 [shape = 's32[1]{0}', space=sflag, size = 0x4, scoped, tag = 'scoped memory for tpu_custom_call.1']
    #allocation7 [shape = 'u8[8192]{0}', space=vmem, size = 0x2000, scoped, tag = 'output window, operand 0, single buffered']
    %8 = vsyncpa [#allocation5], 0
    %9 = vsyncpa [#allocation6], 0
    // Predicated region
    $region2: #{tpu_custom_call.1} parent=1 // pred_check
      _
    $region3: #{tpu_custom_call.1} parent=1 // pred_check_branch
      %11 = sbr.rel (0) target = $region5
    $region4: #{tpu_custom_call.1} parent=1 // pred_region
      %s13 = ssub.s32 256, 256
      %14 = vsyncadd [#allocation5], %s13
      %s15 = sshll.u32 [#allocation4], 4
      %s16 = int_to_ptr.vmem [resolvable:$true] %s15
      %21 = dma.hbm_to_vmem [thread:$0]  %s1, 256, %s16, [#allocation5], 128, 128, 8
    $region5: #{tpu_custom_call.1} parent=1 // pred_fallthru
      _
    // Predicated region
    $region6: #{tpu_custom_call.1} parent=1 // pred_check
      _
    $region7: #{tpu_custom_call.1} parent=1 // pred_check_branch
      %23 = sbr.rel (0) target = $region9
    $region8: #{tpu_custom_call.1} parent=1 // pred_region
      %24 = dma.done [#allocation5], 256
    $region9: #{tpu_custom_call.1} parent=1 // pred_fallthru
      _
    %s25 = sld [smem:[#allocation3]]
    %v26 = vld [vmem:[#allocation4] sm:$0xff]
    %v27 = vld [vmem:[#allocation4 + $0x8] sm:$0xff]
    %v28 = vstv %s25
    %v29 = vmul.f32 %v26, %v28
    %v30 = vmul.f32 %v27, %v28
    %v31 = vmax.f32 %v29, 0.0
    %v32 = vmax.f32 %v30, 0.0
    %v33 = vmin.f32 %v31, 1.0
    %v34 = vmin.f32 %v32, 1.0
    %35 = vst [vmem:[#allocation7] sm:$0xff] %v33
    %36 = vst [vmem:[#allocation7 + $0x8] sm:$0xff] %v34
    // Predicated region
    $region10: #{tpu_custom_call.1} parent=1 // pred_check
      _
    $region11: #{tpu_custom_call.1} parent=1 // pred_check_branch
      %38 = sbr.rel (0) target = $region13
    $region12: #{tpu_custom_call.1} parent=1 // pred_region
      %s40 = ssub.s32 256, 256
      %41 = vsyncadd [#allocation6], %s40
      %s42 = sshll.u32 [#allocation7], 4
      %s43 = int_to_ptr.vmem [resolvable:$true] %s42
      %48 = dma.vmem_to_hbm [thread:$0]  %s43, 256, %s2, [#allocation6], 128, 128, 8
    $region13: #{tpu_custom_call.1} parent=1 // pred_fallthru
      _
    // Predicated region
    $region14: #{tpu_custom_call.1} parent=1 // pred_check
      _
    $region15: #{tpu_custom_call.1} parent=1 // pred_check_branch
      %50 = sbr.rel (0) target = $region17
    $region16: #{tpu_custom_call.1} parent=1 // pred_region
      %51 = dma.done [#allocation6], 256
    $region17: #{tpu_custom_call.1} parent=1 // pred_fallthru
      _
    %52 = vsyncpa [#allocation5], 1
    %53 = vsyncpa [#allocation6], 1

</llo_original>
